<compile_context>
chip_gen: v7x
topology: tpu7x:2x2x1
jax: 0.10.0
libtpu: 0.0.40
codegen_flags: <defaults>
</compile_context>

<pallas_src>
import functools

import jax
import jax.numpy as jnp
from jax.experimental import pallas as pl
from jax.experimental.pallas import tpu as pltpu


INPUT_DIM = 2
INDEX_DIM = 1
Y_DIM = 1
HIDDEN_DIM = 128
IN_FEATURES = INPUT_DIM + INDEX_DIM + Y_DIM   # 4 (condition_training=True)
OUT_PAD = 8      # narrow, lane-masked output block; wrapper slices [:, :2]


def _bf16_activations_supported():
    # v6e / v7x have a bf16 VPU/EUP datapath; v5e and older do not.
    try:
        kind = jax.devices()[0].device_kind.lower()
    except Exception:
        return False
    return ("v6" in kind) or ("v7" in kind) or ("7x" in kind)


def _swish_f32(x):
    return jax.nn.sigmoid(x) * x


def _mlp_kernel(h_ref,
                w1_ref, b1_ref,
                w2_ref, b2_ref,
                w3_ref, b3_ref,
                w4_ref, b4_ref,
                o_ref,
                *, bf16_act):
    # Layer 1 fully in f32: K=4 so its MXU cost is negligible, and it keeps the
    # raw conditioning inputs (x, t, y) at full precision.
    h = h_ref[...]
    z1 = jnp.dot(h, w1_ref[...], preferred_element_type=jnp.float32) + b1_ref[...]

    if bf16_act:
        # bf16 sigmoid/mul (EUP/VPU run bf16 at ~2x the f32 rate on v6e/v7x);
        # the result is already the bf16 MXU operand for the next layer.
        def act(z):
            zb = z.astype(jnp.bfloat16)
            return jax.nn.sigmoid(zb) * zb
    else:
        # v5e: no bf16 VPU/EUP — keep Swish in f32, cast for the MXU afterward.
        def act(z):
            return _swish_f32(z).astype(jnp.bfloat16)

    a1 = act(z1)
    z2 = jnp.dot(a1, w2_ref[...], preferred_element_type=jnp.float32) + b2_ref[...]
    a2 = act(z2)
    z3 = jnp.dot(a2, w3_ref[...], preferred_element_type=jnp.float32) + b3_ref[...]
    a3 = act(z3)
    out = jnp.dot(a3, w4_ref[...], preferred_element_type=jnp.float32) + b4_ref[...]
    o_ref[...] = out.astype(o_ref.dtype)   # (tile, 8) store — tiny writeback


def _round_up(n, m):
    return ((n + m - 1) // m) * m


@functools.partial(jax.jit, static_argnames=("batch_tile",))
def mlp_pallas(h, kparams, batch_tile=1024):
    """h: (B, IN_FEATURES) float32 concat.  Returns (B, INPUT_DIM) float32."""
    B = h.shape[0]
    w1, b1, w2, b2, w3, b3, w4, b4 = kparams

    # Tile selection:
    #  * B <= 8: one full-extent block (block dim == array dim is legal),
    #  * otherwise: multiple of 8, capped at batch_tile, and no larger than
    #    ~B/2 so the grid has >= 2 "parallel" steps (both v7x TensorCores work).
    if B <= 8:
        tile = B
    else:
        tile = min(batch_tile, max(8, _round_up(-(-B // 2), 8)))
    grid = pl.cdiv(B, tile)   # partial final block handled by Pallas masking

    bf16_act = _bf16_activations_supported()
    kernel = functools.partial(_mlp_kernel, bf16_act=bf16_act)

    full = lambda a: pl.BlockSpec(a.shape, lambda i: (0,) * a.ndim)

    grid_spec = pltpu.PrefetchScalarGridSpec(
        num_scalar_prefetch=0,
        grid=(grid,),
        in_specs=[
            pl.BlockSpec((tile, IN_FEATURES), lambda i: (i, 0)),
            full(w1), full(b1),
            full(w2), full(b2),
            full(w3), full(b3),
            full(w4), full(b4),
        ],
        out_specs=pl.BlockSpec((tile, OUT_PAD), lambda i: (i, 0)),
    )

    out = pl.pallas_call(
        kernel,
        out_shape=jax.ShapeDtypeStruct((B, OUT_PAD), jnp.float32),
        grid_spec=grid_spec,
        compiler_params=pltpu.CompilerParams(
            dimension_semantics=("parallel",)),   # megacore sharding on v7x
    )(h, w1, b1, w2, b2, w3, b3, w4, b4)

    return out[:, :INPUT_DIM]


def init_params(key):
    """f32 master params; init matches nn.Linear default U(-1/sqrt(fan_in), +)."""
    dims = [(IN_FEATURES, HIDDEN_DIM),
            (HIDDEN_DIM, HIDDEN_DIM),
            (HIDDEN_DIM, HIDDEN_DIM),
            (HIDDEN_DIM, INPUT_DIM)]
    params = []
    for (fan_in, fan_out) in dims:
        key, kw, kb = jax.random.split(key, 3)
        bound = 1.0 / (fan_in ** 0.5)
        w = jax.random.uniform(kw, (fan_in, fan_out), jnp.float32,
                               minval=-bound, maxval=bound)
        b = jax.random.uniform(kb, (1, fan_out), jnp.float32,
                               minval=-bound, maxval=bound)
        params += [w, b]
    return tuple(params)


def prepare_params(params):
    """Layer 1 stays f32; layers 2-4 cast to bf16; W4/b4 zero-padded to 8 cols."""
    w1, b1, w2, b2, w3, b3, w4, b4 = params
    w4p = jnp.zeros((HIDDEN_DIM, OUT_PAD), jnp.bfloat16)
    w4p = w4p.at[:, :INPUT_DIM].set(w4.astype(jnp.bfloat16))
    b4p = jnp.zeros((1, OUT_PAD), jnp.float32)
    b4p = b4p.at[:, :INPUT_DIM].set(b4)
    return (w1, b1,
            w2.astype(jnp.bfloat16), b2,
            w3.astype(jnp.bfloat16), b3,
            w4p, b4p)


def mlp_forward(kparams, x, t, y):
    """Mirrors MLP.forward (condition_training=True). Concat/reshape in JAX."""
    sz = x.shape
    xi = x.reshape(-1, INPUT_DIM)
    ti = t.reshape(-1, INDEX_DIM).astype(jnp.float32)
    yi = y.reshape(-1, Y_DIM).astype(jnp.float32)
    h = jnp.concatenate([xi, ti, yi], axis=1)   # (n, 4) f32
    out = mlp_pallas(h, kparams)
    return out.reshape(sz)


def mlp_reference(params, x, t, y):
    """Pure-JAX f32 reference (matches the PyTorch module semantics)."""
    w1, b1, w2, b2, w3, b3, w4, b4 = params
    sz = x.shape
    h = jnp.concatenate([x.reshape(-1, INPUT_DIM),
                         t.reshape(-1, INDEX_DIM).astype(jnp.float32),
                         y.reshape(-1, Y_DIM).astype(jnp.float32)], axis=1)
    a = _swish_f32(h @ w1 + b1)
    a = _swish_f32(a @ w2 + b2)
    a = _swish_f32(a @ w3 + b3)
    out = a @ w4 + b4
    return out.reshape(sz)


if __name__ == "__main__":
    key = jax.random.PRNGKey(0)
    kp, kx, kt, ky = jax.random.split(key, 4)

    params = init_params(kp)
    kparams = prepare_params(params)

    # Small-shape check (2 grid steps of tile=8).
    B = 16
    x = jax.random.normal(kx, (B, INPUT_DIM), jnp.float32)
    t = jax.random.uniform(kt, (B, INDEX_DIM), jnp.float32)
    y = jax.random.normal(ky, (B, Y_DIM), jnp.float32)

    out = jax.block_until_ready(mlp_forward(kparams, x, t, y))
    ref = mlp_reference(params, x, t, y)
    assert out.shape == x.shape
    # bf16 matmul/activation operands (f32 accumulation) -> loosened tolerance.
    assert jnp.allclose(out, ref, atol=3e-2, rtol=3e-2), "mismatch (small batch)"

    # Ragged-batch check exercising the partial final block (no wrapper pad).
    B2 = 100
    kx2, kt2, ky2 = jax.random.split(jax.random.PRNGKey(1), 3)
    x2 = jax.random.normal(kx2, (B2, INPUT_DIM), jnp.float32)
    t2 = jax.random.uniform(kt2, (B2, INDEX_DIM), jnp.float32)
    y2 = jax.random.normal(ky2, (B2, Y_DIM), jnp.float32)
    out2 = jax.block_until_ready(mlp_forward(kparams, x2, t2, y2))
    ref2 = mlp_reference(params, x2, t2, y2)
    assert jnp.allclose(out2, ref2, atol=3e-2, rtol=3e-2), "mismatch (ragged batch)"

    print("KERNEL_OK")
</pallas_src>

<mosaic_0001>
module attributes {stable_mosaic.version = 11 : i64} {
  func.func @_mlp_kernel(%arg0: i32, %arg1: memref<8x4xf32, #tpu.memory_space<vmem>>, %arg2: memref<4x128xf32, #tpu.memory_space<vmem>>, %arg3: memref<1x128xf32, #tpu.memory_space<vmem>>, %arg4: memref<128x128xbf16, #tpu.memory_space<vmem>>, %arg5: memref<1x128xf32, #tpu.memory_space<vmem>>, %arg6: memref<128x128xbf16, #tpu.memory_space<vmem>>, %arg7: memref<1x128xf32, #tpu.memory_space<vmem>>, %arg8: memref<128x8xbf16, #tpu.memory_space<vmem>>, %arg9: memref<1x8xf32, #tpu.memory_space<vmem>>, %arg10: memref<8x8xf32, #tpu.memory_space<vmem>>) attributes {dimension_semantics = [#tpu.dimension_semantics<parallel>], iteration_bounds = array<i64: 2>, scalar_prefetch = 0 : i64, scratch_operands = 0 : i64, tpu.core_type = #tpu.core_type<tc>, window_params = [{transform_indices = @transform_0, window_bounds = array<i64: 8, 4>}, {pipeline_mode = #tpu.pipeline_mode<synchronous>, transform_indices = @transform_1, window_bounds = array<i64: 4, 128>}, {pipeline_mode = #tpu.pipeline_mode<synchronous>, transform_indices = @transform_2, window_bounds = array<i64: 1, 128>}, {pipeline_mode = #tpu.pipeline_mode<synchronous>, transform_indices = @transform_3, window_bounds = array<i64: 128, 128>}, {pipeline_mode = #tpu.pipeline_mode<synchronous>, transform_indices = @transform_4, window_bounds = array<i64: 1, 128>}, {pipeline_mode = #tpu.pipeline_mode<synchronous>, transform_indices = @transform_5, window_bounds = array<i64: 128, 128>}, {pipeline_mode = #tpu.pipeline_mode<synchronous>, transform_indices = @transform_6, window_bounds = array<i64: 1, 128>}, {pipeline_mode = #tpu.pipeline_mode<synchronous>, transform_indices = @transform_7, window_bounds = array<i64: 128, 8>}, {pipeline_mode = #tpu.pipeline_mode<synchronous>, transform_indices = @transform_8, window_bounds = array<i64: 1, 8>}, {transform_indices = @transform_9, window_bounds = array<i64: 8, 8>}]} {
    %c0 = arith.constant 0 : index
    %c0_0 = arith.constant 0 : index
    %0 = vector.load %arg1[%c0, %c0_0] : memref<8x4xf32, #tpu.memory_space<vmem>>, vector<8x4xf32>
    %c0_1 = arith.constant 0 : index
    %c0_2 = arith.constant 0 : index
    %1 = vector.load %arg2[%c0_1, %c0_2] : memref<4x128xf32, #tpu.memory_space<vmem>>, vector<4x128xf32>
    %cst = arith.constant dense<0.000000e+00> : vector<8x128xf32>
    %2 = tpu.matmul %0, %1, %cst {dimension_numbers = #tpu.dot_dimension_numbers<[1], [0], [0], [1], [0, 0, 1, 1], [], []>} : vector<8x4xf32>, vector<4x128xf32>, vector<8x128xf32> -> vector<8x128xf32>
    %c0_3 = arith.constant 0 : index
    %c0_4 = arith.constant 0 : index
    %3 = vector.load %arg3[%c0_3, %c0_4] : memref<1x128xf32, #tpu.memory_space<vmem>>, vector<1x128xf32>
    %4 = vector.broadcast %3 : vector<1x128xf32> to vector<8x128xf32>
    %5 = arith.addf %2, %4 : vector<8x128xf32>
    %6 = arith.negf %5 : vector<8x128xf32>
    %7 = math.exp %6 : vector<8x128xf32>
    %cst_5 = arith.constant 1.000000e+00 : f32
    %8 = vector.broadcast %cst_5 : f32 to vector<8x128xf32>
    %9 = arith.addf %8, %7 : vector<8x128xf32>
    %10 = arith.divf %8, %9 : vector<8x128xf32>
    %11 = arith.mulf %10, %5 : vector<8x128xf32>
    %12 = arith.truncf %11 : vector<8x128xf32> to vector<8x128xbf16>
    %c0_6 = arith.constant 0 : index
    %c0_7 = arith.constant 0 : index
    %13 = vector.load %arg4[%c0_6, %c0_7] : memref<128x128xbf16, #tpu.memory_space<vmem>>, vector<128x128xbf16>
    %cst_8 = arith.constant dense<0.000000e+00> : vector<8x128xf32>
    %14 = tpu.matmul %12, %13, %cst_8 {dimension_numbers = #tpu.dot_dimension_numbers<[1], [0], [0], [1], [0, 0, 1, 1], [], []>} : vector<8x128xbf16>, vector<128x128xbf16>, vector<8x128xf32> -> vector<8x128xf32>
    %c0_9 = arith.constant 0 : index
    %c0_10 = arith.constant 0 : index
    %15 = vector.load %arg5[%c0_9, %c0_10] : memref<1x128xf32, #tpu.memory_space<vmem>>, vector<1x128xf32>
    %16 = vector.broadcast %15 : vector<1x128xf32> to vector<8x128xf32>
    %17 = arith.addf %14, %16 : vector<8x128xf32>
    %18 = arith.negf %17 : vector<8x128xf32>
    %19 = math.exp %18 : vector<8x128xf32>
    %cst_11 = arith.constant 1.000000e+00 : f32
    %20 = vector.broadcast %cst_11 : f32 to vector<8x128xf32>
    %21 = arith.addf %20, %19 : vector<8x128xf32>
    %22 = arith.divf %20, %21 : vector<8x128xf32>
    %23 = arith.mulf %22, %17 : vector<8x128xf32>
    %24 = arith.truncf %23 : vector<8x128xf32> to vector<8x128xbf16>
    %c0_12 = arith.constant 0 : index
    %c0_13 = arith.constant 0 : index
    %25 = vector.load %arg6[%c0_12, %c0_13] : memref<128x128xbf16, #tpu.memory_space<vmem>>, vector<128x128xbf16>
    %cst_14 = arith.constant dense<0.000000e+00> : vector<8x128xf32>
    %26 = tpu.matmul %24, %25, %cst_14 {dimension_numbers = #tpu.dot_dimension_numbers<[1], [0], [0], [1], [0, 0, 1, 1], [], []>} : vector<8x128xbf16>, vector<128x128xbf16>, vector<8x128xf32> -> vector<8x128xf32>
    %c0_15 = arith.constant 0 : index
    %c0_16 = arith.constant 0 : index
    %27 = vector.load %arg7[%c0_15, %c0_16] : memref<1x128xf32, #tpu.memory_space<vmem>>, vector<1x128xf32>
    %28 = vector.broadcast %27 : vector<1x128xf32> to vector<8x128xf32>
    %29 = arith.addf %26, %28 : vector<8x128xf32>
    %30 = arith.negf %29 : vector<8x128xf32>
    %31 = math.exp %30 : vector<8x128xf32>
    %cst_17 = arith.constant 1.000000e+00 : f32
    %32 = vector.broadcast %cst_17 : f32 to vector<8x128xf32>
    %33 = arith.addf %32, %31 : vector<8x128xf32>
    %34 = arith.divf %32, %33 : vector<8x128xf32>
    %35 = arith.mulf %34, %29 : vector<8x128xf32>
    %36 = arith.truncf %35 : vector<8x128xf32> to vector<8x128xbf16>
    %c0_18 = arith.constant 0 : index
    %c0_19 = arith.constant 0 : index
    %37 = vector.load %arg8[%c0_18, %c0_19] : memref<128x8xbf16, #tpu.memory_space<vmem>>, vector<128x8xbf16>
    %cst_20 = arith.constant dense<0.000000e+00> : vector<8x8xf32>
    %38 = tpu.matmul %36, %37, %cst_20 {dimension_numbers = #tpu.dot_dimension_numbers<[1], [0], [0], [1], [0, 0, 1, 1], [], []>} : vector<8x128xbf16>, vector<128x8xbf16>, vector<8x8xf32> -> vector<8x8xf32>
    %c0_21 = arith.constant 0 : index
    %c0_22 = arith.constant 0 : index
    %39 = vector.load %arg9[%c0_21, %c0_22] : memref<1x8xf32, #tpu.memory_space<vmem>>, vector<1x8xf32>
    %40 = vector.broadcast %39 : vector<1x8xf32> to vector<8x8xf32>
    %41 = arith.addf %38, %40 : vector<8x8xf32>
    %c0_23 = arith.constant 0 : index
    %c0_24 = arith.constant 0 : index
    %42 = vector.load %arg10[%c0_23, %c0_24] : memref<8x8xf32, #tpu.memory_space<vmem>>, vector<8x8xf32>
    tpu.vector_store %arg10[%c0_23, %c0_24], %41 {strides = array<i32>} : memref<8x8xf32, #tpu.memory_space<vmem>>, vector<8x8xf32>,
    return
  }
  func.func @transform_0(%arg0: i32) -> (i32, i32) {
    %c0_i32 = arith.constant 0 : i32
    %c0_i32_0 = arith.constant 0 : i32
    return %arg0, %c0_i32 : i32, i32
  }
  func.func @transform_1(%arg0: i32) -> (i32, i32) {
    %c0_i32 = arith.constant 0 : i32
    %c0_i32_0 = arith.constant 0 : i32
    %c0_i32_1 = arith.constant 0 : i32
    return %c0_i32, %c0_i32_0 : i32, i32
  }
  func.func @transform_2(%arg0: i32) -> (i32, i32) {
    %c0_i32 = arith.constant 0 : i32
    %c0_i32_0 = arith.constant 0 : i32
    %c0_i32_1 = arith.constant 0 : i32
    return %c0_i32, %c0_i32_0 : i32, i32
  }
  func.func @transform_3(%arg0: i32) -> (i32, i32) {
    %c0_i32 = arith.constant 0 : i32
    %c0_i32_0 = arith.constant 0 : i32
    %c0_i32_1 = arith.constant 0 : i32
    return %c0_i32, %c0_i32_0 : i32, i32
  }
  func.func @transform_4(%arg0: i32) -> (i32, i32) {
    %c0_i32 = arith.constant 0 : i32
    %c0_i32_0 = arith.constant 0 : i32
    %c0_i32_1 = arith.constant 0 : i32
    return %c0_i32, %c0_i32_0 : i32, i32
  }
  func.func @transform_5(%arg0: i32) -> (i32, i32) {
    %c0_i32 = arith.constant 0 : i32
    %c0_i32_0 = arith.constant 0 : i32
    %c0_i32_1 = arith.constant 0 : i32
    return %c0_i32, %c0_i32_0 : i32, i32
  }
  func.func @transform_6(%arg0: i32) -> (i32, i32) {
    %c0_i32 = arith.constant 0 : i32
    %c0_i32_0 = arith.constant 0 : i32
    %c0_i32_1 = arith.constant 0 : i32
    return %c0_i32, %c0_i32_0 : i32, i32
  }
  func.func @transform_7(%arg0: i32) -> (i32, i32) {
    %c0_i32 = arith.constant 0 : i32
    %c0_i32_0 = arith.constant 0 : i32
    %c0_i32_1 = arith.constant 0 : i32
    return %c0_i32, %c0_i32_0 : i32, i32
  }
  func.func @transform_8(%arg0: i32) -> (i32, i32) {
    %c0_i32 = arith.constant 0 : i32
    %c0_i32_0 = arith.constant 0 : i32
    %c0_i32_1 = arith.constant 0 : i32
    return %c0_i32, %c0_i32_0 : i32, i32
  }
  func.func @transform_9(%arg0: i32) -> (i32, i32) {
    %c0_i32 = arith.constant 0 : i32
    %c0_i32_0 = arith.constant 0 : i32
    return %arg0, %c0_i32 : i32, i32
  }
}

</mosaic_0001>

<llo_original>
// kernel: mlp_pallas.1
$region0: #{mlp_pallas.1}
  #allocation0 [shape = 'u32[]', space=smem, size = 0x4, offset = 0x4, fixed_abs, tag = 'smem constant byte address 0x4 - core index']
  #allocation1 [shape = 'u32[144,128]{1,0:T(1,128)}', space=vmem, size = 0x12000, scoped, tag = 'internal scratch']
  %s0 = inlined_call_operand.vmem [shape: f32[16,4], index: 0, kind: input, shape index: {}]
  %s1 = inlined_call_operand.vmem [shape: f32[4,128], index: 1, kind: input, shape index: {}]
  %s2 = inlined_call_operand.vmem [shape: f32[1,128], index: 2, kind: input, shape index: {}]
  %s3 = inlined_call_operand.vmem [shape: bf16[128,128], index: 3, kind: input, shape index: {}]
  %s4 = inlined_call_operand.vmem [shape: f32[1,128], index: 4, kind: input, shape index: {}]
  %s5 = inlined_call_operand.hbm [shape: bf16[128,128], index: 5, kind: input, shape index: {}]
  %s6 = inlined_call_operand.vmem [shape: f32[1,128], index: 6, kind: input, shape index: {}]
  %s7 = inlined_call_operand.vmem [shape: bf16[128,8], index: 7, kind: input, shape index: {}]
  %s8 = inlined_call_operand.vmem [shape: f32[1,8], index: 8, kind: input, shape index: {}]
  %s9 = inlined_call_operand.vmem [shape: f32[16,8], index: 9, kind: output, shape index: {}]
  %s10 = sld [smem:[#allocation0]]
  $region73: #{mlp_pallas.1} parent=0
    _
  %s12 = ssub.s32 1, %s10
  %s13 = scalar_select 0, %s12, %s10
  $region1: #{mlp_pallas.1} parent=0
    #allocation2 [shape = 'u8[32768]{0}', space=vmem, size = 0x8000, scoped, tag = 'input window, operand 5, single buffered']
    #allocation3 [shape = 's32[2]{0}', space=sflag, size = 0x8, scoped, tag = 'scoped memory for mlp_pallas.1']
    %14 = vsyncpa [#allocation3], 0
    loop: start=0, step=1, limit=4
    $region2: #{mlp_pallas.1} parent=1 // loop_pre_header
      _
    $region3: #{mlp_pallas.1} parent=1 // loop_header
      %s16 = sphi 0, %s20
      %p17 = scmp.ge.s32.totalorder %s16, 4
      %s26 = sphi 0, %s28
      %s29 = sphi 0, %s26
      %s30 = sphi 0, %s29
      %s46 = sphi 0, %s30
      %s50 = sphi 0, %s50
      %s52 = sphi 0, %s50
      %s53 = sphi 0, %s52
      %s67 = sphi 0, %s53
      %s71 = sphi 0, %s71
      %s73 = sphi 0, %s71
      %s74 = sphi 0, %s73
      %s88 = sphi 0, %s74
      %s92 = sphi 0, %s92
      %s94 = sphi 0, %s92
      %s95 = sphi 0, %s94
      %s109 = sphi 0, %s95
      %s113 = sphi 0, %s113
      %s115 = sphi 0, %s113
      %s116 = sphi 0, %s115
      %s130 = sphi 0, %s116
      %s134 = sphi 0, %s134
      %s136 = sphi 0, %s134
      %s137 = sphi 0, %s136
      %s151 = sphi 0, %s137
      %s155 = sphi 0, %s155
      %s157 = sphi 0, %s155
      %s158 = sphi 0, %s157
      %s172 = sphi 0, %s158
      %s176 = sphi 0, %s176
      %s178 = sphi 0, %s176
      %s179 = sphi 0, %s178
      %s193 = sphi 0, %s179
      %s197 = sphi 0, %s197
      %s199 = sphi 0, %s197
      %s200 = sphi 0, %s199
      %s214 = sphi 0, %s200
      %s220 = sphi 0, %s222
      %s223 = sphi 0, %s220
      %s224 = sphi 0, %s223
      %s240 = sphi 0, %s224
    $region4: #{mlp_pallas.1} parent=1 // loop_header_branch
      %19 = sbr.rel (%p17) target = $region8
    $region5: #{mlp_pallas.1} parent=1 // loop_body
      %s21 = ssub.s32 %s16, 1
      %s22 = ssub.s32 %s16, 2
      %s23 = sadd.s32 %s16, 1
      %s24 = ssub.s32 %s16, %s23
      %p25 = scmp.eq.s32.totalorder %s24, 0
      %s27 = sadd.s32 %s26, 1
      %s28 = scalar_select %p25, %s26, %s27
      %p31 = pneg %p25
      %p32 = scmp.eq.s32.totalorder %s16, 1
      %p33 = por %p31, %p32
      %p34 = scmp.ne.s32.totalorder %s26, %s29
      %p35 = scmp.eq.s32.totalorder %s16, 0
      %p36 = por %p34, %p35
      %p37 = scmp.ne.s32.totalorder %s26, %s29
      %p38 = scmp.eq.s32.totalorder %s21, 1
      %p39 = por %p37, %p38
      %p40 = scmp.ne.s32.totalorder %s29, %s30
      %p41 = scmp.eq.s32.totalorder %s21, 0
      %p42 = por %p40, %p41
      %p43 = scmp.ne.s32.totalorder %s29, %s30
      %p44 = scmp.eq.s32.totalorder %s22, 1
      %p45 = por %p43, %p44
      %p47 = scmp.ne.s32.totalorder %s30, %s46
      %p48 = scmp.eq.s32.totalorder %s22, 0
      %p49 = por %p47, %p48
      %s51 = sadd.s32 %s50, 1
      %p54 = scmp.eq.s32.totalorder %s16, 1
      %p55 = scmp.ne.s32.totalorder %s50, %s52
      %p56 = scmp.eq.s32.totalorder %s16, 0
      %p57 = por %p55, %p56
      %p58 = scmp.ne.s32.totalorder %s50, %s52
      %p59 = scmp.eq.s32.totalorder %s21, 1
      %p60 = por %p58, %p59
      %p61 = scmp.ne.s32.totalorder %s52, %s53
      %p62 = scmp.eq.s32.totalorder %s21, 0
      %p63 = por %p61, %p62
      %p64 = scmp.ne.s32.totalorder %s52, %s53
      %p65 = scmp.eq.s32.totalorder %s22, 1
      %p66 = por %p64, %p65
      %p68 = scmp.ne.s32.totalorder %s53, %s67
      %p69 = scmp.eq.s32.totalorder %s22, 0
      %p70 = por %p68, %p69
      %s72 = sadd.s32 %s71, 1
      %p75 = scmp.eq.s32.totalorder %s16, 1
      %p76 = scmp.ne.s32.totalorder %s71, %s73
      %p77 = scmp.eq.s32.totalorder %s16, 0
      %p78 = por %p76, %p77
      %p79 = scmp.ne.s32.totalorder %s71, %s73
      %p80 = scmp.eq.s32.totalorder %s21, 1
      %p81 = por %p79, %p80
      %p82 = scmp.ne.s32.totalorder %s73, %s74
      %p83 = scmp.eq.s32.totalorder %s21, 0
      %p84 = por %p82, %p83
      %p85 = scmp.ne.s32.totalorder %s73, %s74
      %p86 = scmp.eq.s32.totalorder %s22, 1
      %p87 = por %p85, %p86
      %p89 = scmp.ne.s32.totalorder %s74, %s88
      %p90 = scmp.eq.s32.totalorder %s22, 0
      %p91 = por %p89, %p90
      %s93 = sadd.s32 %s92, 1
      %p96 = scmp.eq.s32.totalorder %s16, 1
      %p97 = scmp.ne.s32.totalorder %s92, %s94
      %p98 = scmp.eq.s32.totalorder %s16, 0
      %p99 = por %p97, %p98
      %p100 = scmp.ne.s32.totalorder %s92, %s94
      %p101 = scmp.eq.s32.totalorder %s21, 1
      %p102 = por %p100, %p101
      %p103 = scmp.ne.s32.totalorder %s94, %s95
      %p104 = scmp.eq.s32.totalorder %s21, 0
      %p105 = por %p103, %p104
      %p106 = scmp.ne.s32.totalorder %s94, %s95
      %p107 = scmp.eq.s32.totalorder %s22, 1
      %p108 = por %p106, %p107
      %p110 = scmp.ne.s32.totalorder %s95, %s109
      %p111 = scmp.eq.s32.totalorder %s22, 0
      %p112 = por %p110, %p111
      %s114 = sadd.s32 %s113, 1
      %p117 = scmp.eq.s32.totalorder %s16, 1
      %p118 = scmp.ne.s32.totalorder %s113, %s115
      %p119 = scmp.eq.s32.totalorder %s16, 0
      %p120 = por %p118, %p119
      %p121 = scmp.ne.s32.totalorder %s113, %s115
      %p122 = scmp.eq.s32.totalorder %s21, 1
      %p123 = por %p121, %p122
      %p124 = scmp.ne.s32.totalorder %s115, %s116
      %p125 = scmp.eq.s32.totalorder %s21, 0
      %p126 = por %p124, %p125
      %p127 = scmp.ne.s32.totalorder %s115, %s116
      %p128 = scmp.eq.s32.totalorder %s22, 1
      %p129 = por %p127, %p128
      %p131 = scmp.ne.s32.totalorder %s116, %s130
      %p132 = scmp.eq.s32.totalorder %s22, 0
      %p133 = por %p131, %p132
      %s135 = sadd.s32 %s134, 1
      %p138 = scmp.eq.s32.totalorder %s16, 1
      %p139 = scmp.ne.s32.totalorder %s134, %s136
      %p140 = scmp.eq.s32.totalorder %s16, 0
      %p141 = por %p139, %p140
      %p142 = scmp.ne.s32.totalorder %s134, %s136
      %p143 = scmp.eq.s32.totalorder %s21, 1
      %p144 = por %p142, %p143
      %p145 = scmp.ne.s32.totalorder %s136, %s137
      %p146 = scmp.eq.s32.totalorder %s21, 0
      %p147 = por %p145, %p146
      %p148 = scmp.ne.s32.totalorder %s136, %s137
      %p149 = scmp.eq.s32.totalorder %s22, 1
      %p150 = por %p148, %p149
      %p152 = scmp.ne.s32.totalorder %s137, %s151
      %p153 = scmp.eq.s32.totalorder %s22, 0
      %p154 = por %p152, %p153
      %s156 = sadd.s32 %s155, 1
      %p159 = scmp.eq.s32.totalorder %s16, 1
      %p160 = scmp.ne.s32.totalorder %s155, %s157
      %p161 = scmp.eq.s32.totalorder %s16, 0
      %p162 = por %p160, %p161
      %p163 = scmp.ne.s32.totalorder %s155, %s157
      %p164 = scmp.eq.s32.totalorder %s21, 1
      %p165 = por %p163, %p164
      %p166 = scmp.ne.s32.totalorder %s157, %s158
      %p167 = scmp.eq.s32.totalorder %s21, 0
      %p168 = por %p166, %p167
      %p169 = scmp.ne.s32.totalorder %s157, %s158
      %p170 = scmp.eq.s32.totalorder %s22, 1
      %p171 = por %p169, %p170
      %p173 = scmp.ne.s32.totalorder %s158, %s172
      %p174 = scmp.eq.s32.totalorder %s22, 0
      %p175 = por %p173, %p174
      %s177 = sadd.s32 %s176, 1
      %p180 = scmp.eq.s32.totalorder %s16, 1
      %p181 = scmp.ne.s32.totalorder %s176, %s178
      %p182 = scmp.eq.s32.totalorder %s16, 0
      %p183 = por %p181, %p182
      %p184 = scmp.ne.s32.totalorder %s176, %s178
      %p185 = scmp.eq.s32.totalorder %s21, 1
      %p186 = por %p184, %p185
      %p187 = scmp.ne.s32.totalorder %s178, %s179
      %p188 = scmp.eq.s32.totalorder %s21, 0
      %p189 = por %p187, %p188
      %p190 = scmp.ne.s32.totalorder %s178, %s179
      %p191 = scmp.eq.s32.totalorder %s22, 1
      %p192 = por %p190, %p191
      %p194 = scmp.ne.s32.totalorder %s179, %s193
      %p195 = scmp.eq.s32.totalorder %s22, 0
      %p196 = por %p194, %p195
      %s198 = sadd.s32 %s197, 1
      %p201 = scmp.eq.s32.totalorder %s16, 1
      %p202 = scmp.ne.s32.totalorder %s197, %s199
      %p203 = scmp.eq.s32.totalorder %s16, 0
      %p204 = por %p202, %p203
      %p205 = scmp.ne.s32.totalorder %s197, %s199
      %p206 = scmp.eq.s32.totalorder %s21, 1
      %p207 = por %p205, %p206
      %p208 = scmp.ne.s32.totalorder %s199, %s200
      %p209 = scmp.eq.s32.totalorder %s21, 0
      %p210 = por %p208, %p209
      %p211 = scmp.ne.s32.totalorder %s199, %s200
      %p212 = scmp.eq.s32.totalorder %s22, 1
      %p213 = por %p211, %p212
      %p215 = scmp.ne.s32.totalorder %s200, %s214
      %p216 = scmp.eq.s32.totalorder %s22, 0
      %p217 = por %p215, %p216
      %s218 = ssub.s32 %s16, %s23
      %p219 = scmp.eq.s32.totalorder %s218, 0
      %s221 = sadd.s32 %s220, 1
      %s222 = scalar_select %p219, %s220, %s221
      %p225 = pneg %p219
      %p226 = scmp.eq.s32.totalorder %s16, 1
      %p227 = por %p225, %p226
      %p228 = scmp.ne.s32.totalorder %s220, %s223
      %p229 = scmp.eq.s32.totalorder %s16, 0
      %p230 = por %p228, %p229
      %p231 = scmp.ne.s32.totalorder %s220, %s223
      %p232 = scmp.eq.s32.totalorder %s21, 1
      %p233 = por %p231, %p232
      %p234 = scmp.ne.s32.totalorder %s223, %s224
      %p235 = scmp.eq.s32.totalorder %s21, 0
      %p236 = por %p234, %p235
      %p237 = scmp.ne.s32.totalorder %s223, %s224
      %p238 = scmp.eq.s32.totalorder %s22, 1
      %p239 = por %p237, %p238
      %p241 = scmp.ne.s32.totalorder %s224, %s240
      %p242 = scmp.eq.s32.totalorder %s22, 0
      %p243 = por %p241, %p242
      %p244 = scmp.le.s32.totalorder 1, %s16
      %p245 = scmp.lt.s32.totalorder %s16, 3
      %p246 = pnand %p244, %p245
      %p247 = pneg %p246
      // Predicated region
      $region9: #{mlp_pallas.1} parent=5 // pred_check
        _
      $region10: #{mlp_pallas.1} parent=5 // pred_check_branch
        %249 = sbr.rel (%p246) target = $region12
      $region11: #{mlp_pallas.1} parent=5 // pred_region
        %s250 = ssub.s32 %s16, 1
        // Predicated region
        $region13: #{mlp_pallas.1} parent=11 // pred_check
          %p251 = pneg %p63
        $region14: #{mlp_pallas.1} parent=11 // pred_check_branch
          %253 = sbr.rel (%p251) target = $region16
        $region15: #{mlp_pallas.1} parent=11 // pred_region
          _
        $region16: #{mlp_pallas.1} parent=11 // pred_fallthru
          _
        // Predicated region
        $region17: #{mlp_pallas.1} parent=11 // pred_check
          %p254 = pneg %p84
        $region18: #{mlp_pallas.1} parent=11 // pred_check_branch
          %256 = sbr.rel (%p254) target = $region20
        $region19: #{mlp_pallas.1} parent=11 // pred_region
          _
        $region20: #{mlp_pallas.1} parent=11 // pred_fallthru
          _
        // Predicated region
        $region21: #{mlp_pallas.1} parent=11 // pred_check
          %p257 = pneg %p105
        $region22: #{mlp_pallas.1} parent=11 // pred_check_branch
          %259 = sbr.rel (%p257) target = $region24
        $region23: #{mlp_pallas.1} parent=11 // pred_region
          _
        $region24: #{mlp_pallas.1} parent=11 // pred_fallthru
          _
        // Predicated region
        $region25: #{mlp_pallas.1} parent=11 // pred_check
          %p260 = pneg %p126
        $region26: #{mlp_pallas.1} parent=11 // pred_check_branch
          %262 = sbr.rel (%p260) target = $region28
        $region27: #{mlp_pallas.1} parent=11 // pred_region
          _
        $region28: #{mlp_pallas.1} parent=11 // pred_fallthru
          _
        // Predicated region
        $region29: #{mlp_pallas.1} parent=11 // pred_check
          %p263 = pneg %p147
        $region30: #{mlp_pallas.1} parent=11 // pred_check_branch
          %265 = sbr.rel (%p263) target = $region32
        $region31: #{mlp_pallas.1} parent=11 // pred_region
          %s267 = ssub.s32 1024, 1024
          %268 = vsyncadd [#allocation3], %s267
          %s269 = sshll.u32 [#allocation2], 4
          %s270 = int_to_ptr.vmem [resolvable:$true] %s269
          %275 = dma.hbm_to_vmem [thread:$0]  %s5, 1024, %s270, [#allocation3], 64, 64, 4
        $region32: #{mlp_pallas.1} parent=11 // pred_fallthru
          _
        // Predicated region
        $region33: #{mlp_pallas.1} parent=11 // pred_check
          %p276 = pneg %p168
        $region34: #{mlp_pallas.1} parent=11 // pred_check_branch
          %278 = sbr.rel (%p276) target = $region36
        $region35: #{mlp_pallas.1} parent=11 // pred_region
          _
        $region36: #{mlp_pallas.1} parent=11 // pred_fallthru
          _
        // Predicated region
        $region37: #{mlp_pallas.1} parent=11 // pred_check
          %p279 = pneg %p189
        $region38: #{mlp_pallas.1} parent=11 // pred_check_branch
          %281 = sbr.rel (%p279) target = $region40
        $region39: #{mlp_pallas.1} parent=11 // pred_region
          _
        $region40: #{mlp_pallas.1} parent=11 // pred_fallthru
          _
        // Predicated region
        $region41: #{mlp_pallas.1} parent=11 // pred_check
          %p282 = pneg %p210
        $region42: #{mlp_pallas.1} parent=11 // pred_check_branch
          %284 = sbr.rel (%p282) target = $region44
        $region43: #{mlp_pallas.1} parent=11 // pred_region
          _
        $region44: #{mlp_pallas.1} parent=11 // pred_fallthru
          _
      $region12: #{mlp_pallas.1} parent=5 // pred_fallthru
        _
      %p285 = scmp.lt.s32.totalorder %s16, 2
      // Predicated region
      $region45: #{mlp_pallas.1} parent=5 // pred_check
        %p286 = pneg %p285
      $region46: #{mlp_pallas.1} parent=5 // pred_check_branch
        %288 = sbr.rel (%p286) target = $region48
      $region47: #{mlp_pallas.1} parent=5 // pred_region
        // Predicated region
        $region49: #{mlp_pallas.1} parent=47 // pred_check
          %p289 = pneg %p36
        $region50: #{mlp_pallas.1} parent=47 // pred_check_branch
          %291 = sbr.rel (%p289) target = $region52
        $region51: #{mlp_pallas.1} parent=47 // pred_region
          %p292 = scmp.lt.s32.totalorder %s16, 1
          %s293 = scalar_select %p292, %s16, 1
          %s294 = smul.addr %s293, 8
          %s295 = scalar_lea.vmem %s0, %s294
        $region52: #{mlp_pallas.1} parent=47 // pred_fallthru
          _
      $region48: #{mlp_pallas.1} parent=5 // pred_fallthru
        _
      %p296 = scmp.le.s32.totalorder 1, %s16
      %p297 = scmp.lt.s32.totalorder %s16, 3
      %p298 = pnand %p296, %p297
      %p299 = pneg %p298
      // Predicated region
      $region53: #{mlp_pallas.1} parent=5 // pred_check
        _
      $region54: #{mlp_pallas.1} parent=5 // pred_check_branch
        %301 = sbr.rel (%p298) target = $region56
      $region55: #{mlp_pallas.1} parent=5 // pred_region
        %s302 = ssub.s32 %s16, 1
        // Predicated region
        $region57: #{mlp_pallas.1} parent=55 // pred_check
          %p303 = pneg %p147
        $region58: #{mlp_pallas.1} parent=55 // pred_check_branch
          %305 = sbr.rel (%p303) target = $region60
        $region59: #{mlp_pallas.1} parent=55 // pred_region
          %306 = dma.done [#allocation3], 1024
        $region60: #{mlp_pallas.1} parent=55 // pred_fallthru
          _
        %p307 = scmp.lt.s32.totalorder %s21, 1
        %s308 = scalar_select %p307, %s21, 1
        %s309 = smul.addr %s308, 8
        %s310 = scalar_lea.vmem %s0, %s309
        %p311 = pneg %p42
        %p312 = pneg %p39
        %p313 = pneg %p63
        %p314 = pneg %p60
        %p315 = pneg %p84
        %p316 = pneg %p81
        %p317 = pneg %p105
        %p318 = pneg %p102
        %p319 = pneg %p126
        %p320 = pneg %p123
        %p321 = pneg %p147
        %p322 = pneg %p144
        %p323 = pneg %p168
        %p324 = pneg %p165
        %p325 = pneg %p189
        %p326 = pneg %p186
        %p327 = pneg %p210
        %p328 = pneg %p207
        %p329 = pneg %p236
        %p330 = pneg %p233
        %p331 = scmp.lt.s32.totalorder %s21, 1
        %s332 = scalar_select %p331, %s21, 1
        %s333 = smul.addr %s332, 8
        %s334 = scalar_lea.vmem %s9, %s333
        %p335 = scmp.lt.s32.totalorder %s21, 1
        %s336 = scalar_select %p335, %s21, 1
        %s337 = smul.addr %s336, 8
        %s338 = scalar_lea.vmem %s0, %s337
        %p339 = scmp.lt.s32.totalorder %s21, 1
        %s340 = scalar_select %p339, %s21, 1
        %s341 = smul.addr %s340, 8
        %s342 = scalar_lea.vmem %s9, %s341
        %v344 = vld [vmem:[%s338] sm:$0xff]
        %v345 = vld [vmem:[%s1] sm:$0xf]
        %v346 = vld [vmem:[%s2] sm:$0x1]
        %v348 = vlaneseq
        %v349 = vshrl.u32 %v348, 7
        %v350 = vsub.s32 0, %v349
        %v351 = vrot.slane %v346, %v350
        %vm353 = vcmask 31744
        %v355 = vsel %vm353, %v344, 0
        %vm357 = vcmask 1043456
        %v359 = vsel %vm357, %v345, 0
        %361 = vmatprep.subr.mxu0 0.0
        %362 = vmatpush1.msra.mxu0 %v359
        %363 = vmatprep.subr.mxu0 0.0
        %364 = vmatpush1.msra.mxu0 0.0
        %365 = vmatprep.subr.mxu0 0.0
        %366 = vmatpush1.msra.mxu0 0.0
        %367 = vmatprep.subr.mxu0 0.0
        %368 = vmatpush1.msra.mxu0 0.0
        %369 = vmatprep.subr.mxu0 0.0
        %370 = vmatpush1.msra.mxu0 0.0
        %371 = vmatprep.subr.mxu0 0.0
        %372 = vmatpush1.msra.mxu0 0.0
        %373 = vmatprep.subr.mxu0 0.0
        %374 = vmatpush1.msra.mxu0 0.0
        %375 = vmatprep.subr.mxu0 0.0
        %376 = vmatpush1.msra.mxu0 0.0
        %377 = vmatprep.subr.mxu0 0.0
        %378 = vmatpush1.msra.mxu0 0.0
        %379 = vmatprep.subr.mxu0 0.0
        %380 = vmatpush1.msra.mxu0 0.0
        %381 = vmatprep.subr.mxu0 0.0
        %382 = vmatpush1.msra.mxu0 0.0
        %383 = vmatprep.subr.mxu0 0.0
        %384 = vmatpush1.msra.mxu0 0.0
        %385 = vmatprep.subr.mxu0 0.0
        %386 = vmatpush1.msra.mxu0 0.0
        %387 = vmatprep.subr.mxu0 0.0
        %388 = vmatpush1.msra.mxu0 0.0
        %389 = vmatprep.subr.mxu0 0.0
        %390 = vmatpush1.msra.mxu0 0.0
        %391 = vmatprep.subr.mxu0 0.0
        %392 = vmatpush1.msra.mxu0 0.0
        %393 = vmatprep.subr.mxu0 0.0
        %394 = vmatpush1.msra.mxu0 0.0
        %395 = vmatprep.subr.mxu0 0.0
        %396 = vmatpush1.msra.mxu0 0.0
        %397 = vmatprep.subr.mxu0 0.0
        %398 = vmatpush1.msra.mxu0 0.0
        %399 = vmatprep.subr.mxu0 0.0
        %400 = vmatpush1.msra.mxu0 0.0
        %401 = vmatprep.subr.mxu0 0.0
        %402 = vmatpush1.msra.mxu0 0.0
        %403 = vmatprep.subr.mxu0 0.0
        %404 = vmatpush1.msra.mxu0 0.0
        %405 = vmatprep.subr.mxu0 0.0
        %406 = vmatpush1.msra.mxu0 0.0
        %407 = vmatprep.subr.mxu0 0.0
        %408 = vmatpush1.msra.mxu0 0.0
        %409 = vmatprep.subr.mxu0 0.0
        %410 = vmatpush1.msra.mxu0 0.0
        %411 = vmatprep.subr.mxu0 0.0
        %412 = vmatpush1.msra.mxu0 0.0
        %413 = vmatprep.subr.mxu0 0.0
        %414 = vmatpush1.msra.mxu0 0.0
        %415 = vmatprep.subr.mxu0 0.0
        %416 = vmatpush1.msra.mxu0 0.0
        %417 = vmatprep.subr.mxu0 0.0
        %418 = vmatpush1.msra.mxu0 0.0
        %419 = vmatprep.subr.mxu0 0.0
        %420 = vmatpush1.msra.mxu0 0.0
        %421 = vmatprep.subr.mxu0 0.0
        %422 = vmatpush1.msra.mxu0 0.0
        %423 = vmatprep.subr.mxu0 0.0
        %424 = vmatpush1.msra.mxu0 0.0
        %425 = vmatprep.mubr.f32.mxu0 0.0
        %426 = vmatmul.mubr.f32.gmra.mrb[0].mxu0 %v355
        %v427 = vpop.f32.mrb[0].mxu0
        %v428 = vadd.f32 %v351, %v427
        %v429 = vpop.f32.mrb[0].mxu0
        %430 = vdwg.mxu0
        %v431 = vxor.u32 %v428, 2147483648
        %v432 = vmul.f32 %v431, 1.442695
        %v433 = vpow.pop %v432
        %v434 = vadd.f32 %v433, 1.0
        %v435 = vrcp.pop %v434
        %v436 = vmul.f32 1.0, %v435
        %v437 = vmul.f32 %v436, %v428
        %v438 = vpack.c.bf16 %v437, %v437
        %v439 = vld [vmem:[%s3] sm:$0xf]
        %v440 = vld [vmem:[%s3 + $0x4] sm:$0xf]
        %v441 = vld [vmem:[%s3 + $0x8] sm:$0xf]
        %v442 = vld [vmem:[%s3 + $0xc] sm:$0xf]
        %v443 = vld [vmem:[%s3 + $0x10] sm:$0xf]
        %v444 = vld [vmem:[%s3 + $0x14] sm:$0xf]
        %v445 = vld [vmem:[%s3 + $0x18] sm:$0xf]
        %v446 = vld [vmem:[%s3 + $0x1c] sm:$0xf]
        %v447 = vld [vmem:[%s3 + $0x20] sm:$0xf]
        %v448 = vld [vmem:[%s3 + $0x24] sm:$0xf]
        %v449 = vld [vmem:[%s3 + $0x28] sm:$0xf]
        %v450 = vld [vmem:[%s3 + $0x2c] sm:$0xf]
        %v451 = vld [vmem:[%s3 + $0x30] sm:$0xf]
        %v452 = vld [vmem:[%s3 + $0x34] sm:$0xf]
        %v453 = vld [vmem:[%s3 + $0x38] sm:$0xf]
        %v454 = vld [vmem:[%s3 + $0x3c] sm:$0xf]
        %v455 = vld [vmem:[%s4] sm:$0x1]
        %v457 = vlaneseq
        %v458 = vshrl.u32 %v457, 7
        %v459 = vsub.s32 0, %v458
        %v460 = vrot.slane %v455, %v459
        %v478 = vunpack.c.l.b16 %v439
        %v479 = vunpack.c.l.b16 %v440
        %v480 = vunpack.c.l.b16 %v441
        %v481 = vunpack.c.l.b16 %v442
        %v482 = vunpack.c.l.b16 %v443
        %v483 = vunpack.c.l.b16 %v444
        %v484 = vunpack.c.l.b16 %v445
        %v485 = vunpack.c.l.b16 %v446
        %v486 = vunpack.c.l.b16 %v447
        %v487 = vunpack.c.l.b16 %v448
        %v488 = vunpack.c.l.b16 %v449
        %v489 = vunpack.c.l.b16 %v450
        %v490 = vunpack.c.l.b16 %v451
        %v491 = vunpack.c.l.b16 %v452
        %v492 = vunpack.c.l.b16 %v453
        %v493 = vunpack.c.l.b16 %v454
        %v494 = vpack.c.b16 %v479, %v478
        %v495 = vpack.c.b16 %v481, %v480
        %v496 = vpack.c.b16 %v483, %v482
        %v497 = vpack.c.b16 %v485, %v484
        %v498 = vpack.c.b16 %v487, %v486
        %v499 = vpack.c.b16 %v489, %v488
        %v500 = vpack.c.b16 %v491, %v490
        %v501 = vpack.c.b16 %v493, %v492
        %510 = vmatprep.subr.bf16.mxu0 0
        %511 = vmatpush1.bf16.msra.mxu0 %v494
        %512 = vmatprep.subr.bf16.mxu0 0
        %513 = vmatpush1.bf16.msra.mxu0 %v495
        %514 = vmatprep.subr.bf16.mxu0 0
        %515 = vmatpush1.bf16.msra.mxu0 %v496
        %516 = vmatprep.subr.bf16.mxu0 0
        %517 = vmatpush1.bf16.msra.mxu0 %v497
        %518 = vmatprep.subr.bf16.mxu0 0
        %519 = vmatpush1.bf16.msra.mxu0 %v498
        %520 = vmatprep.subr.bf16.mxu0 0
        %521 = vmatpush1.bf16.msra.mxu0 %v499
        %522 = vmatprep.subr.bf16.mxu0 0
        %523 = vmatpush1.bf16.msra.mxu0 %v500
        %524 = vmatprep.subr.bf16.mxu0 0
        %525 = vmatpush1.bf16.msra.mxu0 %v501
        %526 = vmatprep.subr.bf16.mxu0 0
        %527 = vmatpush1.bf16.msra.mxu0 0
        %528 = vmatprep.subr.bf16.mxu0 0
        %529 = vmatpush1.bf16.msra.mxu0 0
        %530 = vmatprep.subr.bf16.mxu0 0
        %531 = vmatpush1.bf16.msra.mxu0 0
        %532 = vmatprep.subr.bf16.mxu0 0
        %533 = vmatpush1.bf16.msra.mxu0 0
        %534 = vmatprep.subr.bf16.mxu0 0
        %535 = vmatpush1.bf16.msra.mxu0 0
        %536 = vmatprep.subr.bf16.mxu0 0
        %537 = vmatpush1.bf16.msra.mxu0 0
        %538 = vmatprep.subr.bf16.mxu0 0
        %539 = vmatpush1.bf16.msra.mxu0 0
        %540 = vmatprep.subr.bf16.mxu0 0
        %541 = vmatpush1.bf16.msra.mxu0 0
        %542 = vmatprep.mubr.bf16.mxu0 0
        %543 = vmatmul.mubr.bf16.gmra.mrb[0].mxu0 %v438
        %v544 = vpop.f32.mrb[0].mxu0
        %v545 = vadd.f32 %v460, %v544
        %v546 = vpop.f32.mrb[0].mxu0
        %v547 = vpop.f32.mrb[0].mxu0
        %v548 = vpop.f32.mrb[0].mxu0
        %549 = vdwg.mxu0
        %v550 = vxor.u32 %v545, 2147483648
        %v551 = vmul.f32 %v550, 1.442695
        %v552 = vpow.pop %v551
        %v553 = vadd.f32 %v552, 1.0
        %v554 = vrcp.pop %v553
        %v555 = vmul.f32 1.0, %v554
        %v556 = vmul.f32 %v555, %v545
        %v557 = vpack.c.bf16 %v556, %v556
        %v558 = vld [vmem:[#allocation2] sm:$0xf]
        %v559 = vld [vmem:[#allocation2 + $0x4] sm:$0xf]
        %v560 = vld [vmem:[#allocation2 + $0x8] sm:$0xf]
        %v561 = vld [vmem:[#allocation2 + $0xc] sm:$0xf]
        %v562 = vld [vmem:[#allocation2 + $0x10] sm:$0xf]
        %v563 = vld [vmem:[#allocation2 + $0x14] sm:$0xf]
        %v564 = vld [vmem:[#allocation2 + $0x18] sm:$0xf]
        %v565 = vld [vmem:[#allocation2 + $0x1c] sm:$0xf]
        %v566 = vld [vmem:[#allocation2 + $0x20] sm:$0xf]
        %v567 = vld [vmem:[#allocation2 + $0x24] sm:$0xf]
        %v568 = vld [vmem:[#allocation2 + $0x28] sm:$0xf]
        %v569 = vld [vmem:[#allocation2 + $0x2c] sm:$0xf]
        %v570 = vld [vmem:[#allocation2 + $0x30] sm:$0xf]
        %v571 = vld [vmem:[#allocation2 + $0x34] sm:$0xf]
        %v572 = vld [vmem:[#allocation2 + $0x38] sm:$0xf]
        %v573 = vld [vmem:[#allocation2 + $0x3c] sm:$0xf]
        %v574 = vld [vmem:[%s6] sm:$0x1]
        %v576 = vlaneseq
        %v577 = vshrl.u32 %v576, 7
        %v578 = vsub.s32 0, %v577
        %v579 = vrot.slane %v574, %v578
        %v597 = vunpack.c.l.b16 %v558
        %v598 = vunpack.c.l.b16 %v559
        %v599 = vunpack.c.l.b16 %v560
        %v600 = vunpack.c.l.b16 %v561
        %v601 = vunpack.c.l.b16 %v562
        %v602 = vunpack.c.l.b16 %v563
        %v603 = vunpack.c.l.b16 %v564
        %v604 = vunpack.c.l.b16 %v565
        %v605 = vunpack.c.l.b16 %v566
        %v606 = vunpack.c.l.b16 %v567
        %v607 = vunpack.c.l.b16 %v568
        %v608 = vunpack.c.l.b16 %v569
        %v609 = vunpack.c.l.b16 %v570
        %v610 = vunpack.c.l.b16 %v571
        %v611 = vunpack.c.l.b16 %v572
        %v612 = vunpack.c.l.b16 %v573
        %v613 = vpack.c.b16 %v598, %v597
        %v614 = vpack.c.b16 %v600, %v599
        %v615 = vpack.c.b16 %v602, %v601
        %v616 = vpack.c.b16 %v604, %v603
        %v617 = vpack.c.b16 %v606, %v605
        %v618 = vpack.c.b16 %v608, %v607
        %v619 = vpack.c.b16 %v610, %v609
        %v620 = vpack.c.b16 %v612, %v611
        %629 = vmatprep.subr.bf16.mxu0 0
        %630 = vmatpush1.bf16.msra.mxu0 %v613
        %631 = vmatprep.subr.bf16.mxu0 0
        %632 = vmatpush1.bf16.msra.mxu0 %v614
        %633 = vmatprep.subr.bf16.mxu0 0
        %634 = vmatpush1.bf16.msra.mxu0 %v615
        %635 = vmatprep.subr.bf16.mxu0 0
        %636 = vmatpush1.bf16.msra.mxu0 %v616
        %637 = vmatprep.subr.bf16.mxu0 0
        %638 = vmatpush1.bf16.msra.mxu0 %v617
        %639 = vmatprep.subr.bf16.mxu0 0
        %640 = vmatpush1.bf16.msra.mxu0 %v618
        %641 = vmatprep.subr.bf16.mxu0 0
        %642 = vmatpush1.bf16.msra.mxu0 %v619
        %643 = vmatprep.subr.bf16.mxu0 0
        %644 = vmatpush1.bf16.msra.mxu0 %v620
        %645 = vmatprep.subr.bf16.mxu0 0
        %646 = vmatpush1.bf16.msra.mxu0 0
        %647 = vmatprep.subr.bf16.mxu0 0
        %648 = vmatpush1.bf16.msra.mxu0 0
        %649 = vmatprep.subr.bf16.mxu0 0
        %650 = vmatpush1.bf16.msra.mxu0 0
        %651 = vmatprep.subr.bf16.mxu0 0
        %652 = vmatpush1.bf16.msra.mxu0 0
        %653 = vmatprep.subr.bf16.mxu0 0
        %654 = vmatpush1.bf16.msra.mxu0 0
        %655 = vmatprep.subr.bf16.mxu0 0
        %656 = vmatpush1.bf16.msra.mxu0 0
        %657 = vmatprep.subr.bf16.mxu0 0
        %658 = vmatpush1.bf16.msra.mxu0 0
        %659 = vmatprep.subr.bf16.mxu0 0
        %660 = vmatpush1.bf16.msra.mxu0 0
        %661 = vmatprep.mubr.bf16.mxu0 0
        %662 = vmatmul.mubr.bf16.gmra.mrb[0].mxu0 %v557
        %v663 = vpop.f32.mrb[0].mxu0
        %v664 = vadd.f32 %v579, %v663
        %v665 = vpop.f32.mrb[0].mxu0
        %v666 = vpop.f32.mrb[0].mxu0
        %v667 = vpop.f32.mrb[0].mxu0
        %668 = vdwg.mxu0
        %v669 = vxor.u32 %v664, 2147483648
        %v670 = vmul.f32 %v669, 1.442695
        %v671 = vpow.pop %v670
        %v672 = vadd.f32 %v671, 1.0
        %v673 = vrcp.pop %v672
        %v674 = vmul.f32 1.0, %v673
        %v675 = vmul.f32 %v674, %v664
        %v676 = vpack.c.bf16 %v675, %v675
        %v677 = vld [vmem:[%s7] sm:$0xf]
        %v678 = vld [vmem:[%s7 + $0x4] sm:$0xf]
        %v679 = vld [vmem:[%s7 + $0x8] sm:$0xf]
        %v680 = vld [vmem:[%s7 + $0xc] sm:$0xf]
        %v681 = vld [vmem:[%s7 + $0x10] sm:$0xf]
        %v682 = vld [vmem:[%s7 + $0x14] sm:$0xf]
        %v683 = vld [vmem:[%s7 + $0x18] sm:$0xf]
        %v684 = vld [vmem:[%s7 + $0x1c] sm:$0xf]
        %v685 = vld [vmem:[%s7 + $0x20] sm:$0xf]
        %v686 = vld [vmem:[%s7 + $0x24] sm:$0xf]
        %v687 = vld [vmem:[%s7 + $0x28] sm:$0xf]
        %v688 = vld [vmem:[%s7 + $0x2c] sm:$0xf]
        %v689 = vld [vmem:[%s7 + $0x30] sm:$0xf]
        %v690 = vld [vmem:[%s7 + $0x34] sm:$0xf]
        %v691 = vld [vmem:[%s7 + $0x38] sm:$0xf]
        %v692 = vld [vmem:[%s7 + $0x3c] sm:$0xf]
        %v693 = vld [vmem:[%s8] sm:$0x1]
        %v695 = vlaneseq
        %v696 = vshrl.u32 %v695, 7
        %v697 = vsub.s32 0, %v696
        %v698 = vrot.slane %v693, %v697
        %v716 = vunpack.c.l.b16 %v677
        %v717 = vunpack.c.l.b16 %v678
        %v718 = vunpack.c.l.b16 %v679
        %v719 = vunpack.c.l.b16 %v680
        %v720 = vunpack.c.l.b16 %v681
        %v721 = vunpack.c.l.b16 %v682
        %v722 = vunpack.c.l.b16 %v683
        %v723 = vunpack.c.l.b16 %v684
        %v724 = vunpack.c.l.b16 %v685
        %v725 = vunpack.c.l.b16 %v686
        %v726 = vunpack.c.l.b16 %v687
        %v727 = vunpack.c.l.b16 %v688
        %v728 = vunpack.c.l.b16 %v689
        %v729 = vunpack.c.l.b16 %v690
        %v730 = vunpack.c.l.b16 %v691
        %v731 = vunpack.c.l.b16 %v692
        %v732 = vpack.c.b16 %v717, %v716
        %v733 = vpack.c.b16 %v719, %v718
        %v734 = vpack.c.b16 %v721, %v720
        %v735 = vpack.c.b16 %v723, %v722
        %v736 = vpack.c.b16 %v725, %v724
        %v737 = vpack.c.b16 %v727, %v726
        %v738 = vpack.c.b16 %v729, %v728
        %v739 = vpack.c.b16 %v731, %v730
        %748 = vmatprep.subr.bf16.mxu0 0
        %749 = vmatpush1.bf16.msra.mxu0 %v732
        %750 = vmatprep.subr.bf16.mxu0 0
        %751 = vmatpush1.bf16.msra.mxu0 %v733
        %752 = vmatprep.subr.bf16.mxu0 0
        %753 = vmatpush1.bf16.msra.mxu0 %v734
        %754 = vmatprep.subr.bf16.mxu0 0
        %755 = vmatpush1.bf16.msra.mxu0 %v735
        %756 = vmatprep.subr.bf16.mxu0 0
        %757 = vmatpush1.bf16.msra.mxu0 %v736
        %758 = vmatprep.subr.bf16.mxu0 0
        %759 = vmatpush1.bf16.msra.mxu0 %v737
        %760 = vmatprep.subr.bf16.mxu0 0
        %761 = vmatpush1.bf16.msra.mxu0 %v738
        %762 = vmatprep.subr.bf16.mxu0 0
        %763 = vmatpush1.bf16.msra.mxu0 %v739
        %764 = vmatprep.subr.bf16.mxu0 0
        %765 = vmatpush1.bf16.msra.mxu0 0
        %766 = vmatprep.subr.bf16.mxu0 0
        %767 = vmatpush1.bf16.msra.mxu0 0
        %768 = vmatprep.subr.bf16.mxu0 0
        %769 = vmatpush1.bf16.msra.mxu0 0
        %770 = vmatprep.subr.bf16.mxu0 0
        %771 = vmatpush1.bf16.msra.mxu0 0
        %772 = vmatprep.subr.bf16.mxu0 0
        %773 = vmatpush1.bf16.msra.mxu0 0
        %774 = vmatprep.subr.bf16.mxu0 0
        %775 = vmatpush1.bf16.msra.mxu0 0
        %776 = vmatprep.subr.bf16.mxu0 0
        %777 = vmatpush1.bf16.msra.mxu0 0
        %778 = vmatprep.subr.bf16.mxu0 0
        %779 = vmatpush1.bf16.msra.mxu0 0
        %780 = vmatprep.mubr.bf16.mxu0 0
        %781 = vmatmul.mubr.bf16.gmra.mrb[0].mxu0 %v676
        %v782 = vpop.f32.mrb[0].mxu0
        %v783 = vadd.f32 %v698, %v782
        %v784 = vpop.f32.mrb[0].mxu0
        %v785 = vpop.f32.mrb[0].mxu0
        %v786 = vpop.f32.mrb[0].mxu0
        %787 = vdwg.mxu0
        %vm788 = vcmask 64512
        %789 = vst.msk [vmem:[%s342] sm:$0xff] %vm788, %v783
        %p790 = scmp.lt.s32.totalorder %s21, 1
        %s791 = scalar_select %p790, %s21, 1
        %s792 = smul.addr %s791, 8
        %s793 = scalar_lea.vmem %s9, %s792
        // Predicated region
        $region61: #{mlp_pallas.1} parent=55 // pred_check
          %p794 = pneg %p233
        $region62: #{mlp_pallas.1} parent=55 // pred_check_branch
          %796 = sbr.rel (%p794) target = $region64
        $region63: #{mlp_pallas.1} parent=55 // pred_region
          _
        $region64: #{mlp_pallas.1} parent=55 // pred_fallthru
          _
      $region56: #{mlp_pallas.1} parent=5 // pred_fallthru
        _
      %p797 = scmp.le.s32.totalorder 2, %s16
      // Predicated region
      $region65: #{mlp_pallas.1} parent=5 // pred_check
        %p798 = pneg %p797
      $region66: #{mlp_pallas.1} parent=5 // pred_check_branch
        %800 = sbr.rel (%p798) target = $region68
      $region67: #{mlp_pallas.1} parent=5 // pred_region
        %s801 = ssub.s32 %s16, 2
        // Predicated region
        $region69: #{mlp_pallas.1} parent=67 // pred_check
          %p802 = pneg %p239
        $region70: #{mlp_pallas.1} parent=67 // pred_check_branch
          %804 = sbr.rel (%p802) target = $region72
        $region71: #{mlp_pallas.1} parent=67 // pred_region
          %p805 = scmp.lt.s32.totalorder %s22, 1
          %s806 = scalar_select %p805, %s22, 1
          %s807 = smul.addr %s806, 8
          %s808 = scalar_lea.vmem %s9, %s807
        $region72: #{mlp_pallas.1} parent=67 // pred_fallthru
          _
      $region68: #{mlp_pallas.1} parent=5 // pred_fallthru
        _
    $region6: #{mlp_pallas.1} parent=1 // loop_footer
      %s20 = sadd.s32 1, %s16
    $region7: #{mlp_pallas.1} parent=1 // loop_footer_branch
      %15 = sbr.rel target = $region3
    $region8: #{mlp_pallas.1} parent=1 // loop_exit
      _
    %809 = vsyncpa [#allocation3], 1
    %s810 = scalar_lea.sflag [#allocation3], 1
    %811 = vsyncpa %s810, 1

</llo_original>
